<compile_context>
chip_gen: v7x
topology: tpu7x:2x2x1
jax: 0.10.0
libtpu: 0.0.40
codegen_flags: <defaults>
</compile_context>

<pallas_src>
import jax
import jax.numpy as jnp
from jax.experimental import pallas as pl
from jax.experimental.pallas import tpu as pltpu

QPAD = 8  # lane padding of the final (fc3 -> 1) output layer


def critic_kernel(s_ref, a_ref, w1s_ref, w1a_ref, b1_ref, w2_ref, b2_ref,
                  w3_ref, b3_ref, wq_ref, bq_ref, q_ref):
    # Layer 1: concat([state, action]) @ w1 == state @ w1[:S] + action @ w1[S:]
    h = jnp.dot(s_ref[...], w1s_ref[...], preferred_element_type=jnp.float32)
    h += jnp.dot(a_ref[...], w1a_ref[...], preferred_element_type=jnp.float32)
    h = jnp.maximum(h + b1_ref[...], 0.0)

    # Layer 2
    h = jnp.dot(h.astype(jnp.bfloat16), w2_ref[...],
                preferred_element_type=jnp.float32)
    h = jnp.maximum(h + b2_ref[...], 0.0)

    # Layer 3
    h = jnp.dot(h.astype(jnp.bfloat16), w3_ref[...],
                preferred_element_type=jnp.float32)
    h = jnp.maximum(h + b3_ref[...], 0.0)

    # Output layer (padded to QPAD lanes; wrapper slices [:, :1]).
    q = jnp.dot(h.astype(jnp.bfloat16), wq_ref[...],
                preferred_element_type=jnp.float32)
    q_ref[...] = (q + bq_ref[...]).astype(q_ref.dtype)


def prepare_params(params, input_dims):
    """One-time weight packing (call once, reuse across forward calls):
    bf16 weights, layer-1 split into state/action halves, QPAD-padded q layer."""
    w1, b1, w2, b2, w3, b3, wq, bq = params
    h3 = w3.shape[1]
    w1s = w1[:input_dims].astype(jnp.bfloat16)   # state half of layer-1 weights
    w1a = w1[input_dims:].astype(jnp.bfloat16)   # action half of layer-1 weights
    w2b = w2.astype(jnp.bfloat16)
    w3b = w3.astype(jnp.bfloat16)
    wq_p = jnp.zeros((h3, QPAD), jnp.float32).at[:, :1].set(wq).astype(jnp.bfloat16)
    bq_p = jnp.zeros((1, QPAD), jnp.float32).at[:, :1].set(bq)
    return (w1s, w1a, b1, w2b, b2, w3b, b3, wq_p, bq_p)


def _round_up(x, m):
    return ((x + m - 1) // m) * m


def _choose_batch_tile(B, tb):
    """Batch tile: 16-aligned (bf16 sublanes) for tiny batches, 256-aligned
    otherwise; ensure >= 2 tiles when B >= 512 so v7x's 2nd TC is used."""
    if B <= tb:
        if B >= 512:
            return _round_up(-(-B // 2), 256)   # split across >= 2 tiles
        return _round_up(B, 16)                 # single small tile
    return _round_up(tb, 256)


def critic_forward(state, action, packed_params, *, tb=2048):
    """state: (B, input_dims) f32, action: (B, n_actions) f32 -> q: (B, 1) f32.
    packed_params: output of prepare_params (pre-cast bf16 weights)."""
    w1s, w1a, b1, w2b, b2, w3b, b3, wq_p, bq_p = packed_params
    B, s_dim = state.shape
    a_dim = action.shape[1]

    tb_eff = _choose_batch_tile(B, tb)
    n_tiles = pl.cdiv(B, tb_eff)
    b_pad = n_tiles * tb_eff

    state_b = state.astype(jnp.bfloat16)
    action_b = action.astype(jnp.bfloat16)
    if b_pad != B:
        # Only materialize the zero-pad when the batch isn't tile-aligned.
        state_b = jnp.zeros((b_pad, s_dim), jnp.bfloat16).at[:B].set(state_b)
        action_b = jnp.zeros((b_pad, a_dim), jnp.bfloat16).at[:B].set(action_b)

    const2d = lambda i: (0, 0)   # weights/biases: same block every step -> resident
    batched = lambda i: (i, 0)   # activations/output: tiled along batch

    out = pl.pallas_call(
        critic_kernel,
        out_shape=jax.ShapeDtypeStruct((b_pad, QPAD), jnp.float32),
        grid=(n_tiles,),
        in_specs=[
            pl.BlockSpec((tb_eff, s_dim), batched),   # state tile
            pl.BlockSpec((tb_eff, a_dim), batched),   # action tile
            pl.BlockSpec(w1s.shape, const2d),
            pl.BlockSpec(w1a.shape, const2d),
            pl.BlockSpec(b1.shape, const2d),
            pl.BlockSpec(w2b.shape, const2d),
            pl.BlockSpec(b2.shape, const2d),
            pl.BlockSpec(w3b.shape, const2d),
            pl.BlockSpec(b3.shape, const2d),
            pl.BlockSpec(wq_p.shape, const2d),
            pl.BlockSpec(bq_p.shape, const2d),
        ],
        out_specs=pl.BlockSpec((tb_eff, QPAD), batched),
        compiler_params=pltpu.CompilerParams(
            dimension_semantics=("parallel",)),
    )(state_b, action_b, w1s, w1a, b1, w2b, b2, w3b, b3, wq_p, bq_p)

    return out[:B, :1]


def xavier_uniform(key, fan_in, fan_out, gain=1.0):
    limit = gain * jnp.sqrt(6.0 / (fan_in + fan_out))
    return jax.random.uniform(key, (fan_in, fan_out), jnp.float32, -limit, limit)


def init_params(key, input_dims, n_actions, fc1_dims=256, fc2_dims=256, fc3_dims=256):
    k1, k2, k3, k4 = jax.random.split(key, 4)
    in_dim = input_dims + n_actions
    w1 = xavier_uniform(k1, in_dim, fc1_dims)
    b1 = jnp.zeros((1, fc1_dims), jnp.float32)
    w2 = xavier_uniform(k2, fc1_dims, fc2_dims)
    b2 = jnp.zeros((1, fc2_dims), jnp.float32)
    w3 = xavier_uniform(k3, fc2_dims, fc3_dims)
    b3 = jnp.zeros((1, fc3_dims), jnp.float32)
    wq = xavier_uniform(k4, fc3_dims, 1)
    bq = jnp.zeros((1, 1), jnp.float32)
    return (w1, b1, w2, b2, w3, b3, wq, bq)


def critic_reference_f32(state, action, params):
    x = jnp.concatenate([state, action], axis=1)
    w1, b1, w2, b2, w3, b3, wq, bq = params
    h = jnp.maximum(x @ w1 + b1, 0.0)
    h = jnp.maximum(h @ w2 + b2, 0.0)
    h = jnp.maximum(h @ w3 + b3, 0.0)
    return h @ wq + bq


def critic_reference_bf16(state, action, params):
    # Emulates kernel precision: bf16 matmul operands, f32 accumulation/bias/ReLU.
    w1, b1, w2, b2, w3, b3, wq, bq = params
    bf = jnp.bfloat16
    x = jnp.concatenate([state, action], axis=1).astype(bf)
    h = jnp.dot(x, w1.astype(bf), preferred_element_type=jnp.float32) + b1
    h = jnp.maximum(h, 0.0)
    h = jnp.dot(h.astype(bf), w2.astype(bf), preferred_element_type=jnp.float32) + b2
    h = jnp.maximum(h, 0.0)
    h = jnp.dot(h.astype(bf), w3.astype(bf), preferred_element_type=jnp.float32) + b3
    h = jnp.maximum(h, 0.0)
    return jnp.dot(h.astype(bf), wq.astype(bf), preferred_element_type=jnp.float32) + bq


if __name__ == "__main__":
    key = jax.random.PRNGKey(0)
    k_state, k_action, k_params, k_s2, k_a2 = jax.random.split(key, 5)

    batch = 2
    input_dims = 32   # state dimension (input_dims[0] in the PyTorch module)
    n_actions = 8

    state = jax.random.normal(k_state, (batch, input_dims), jnp.float32)
    action = jax.random.normal(k_action, (batch, n_actions), jnp.float32)
    params = init_params(k_params, input_dims, n_actions)

    # One-time parameter packing (hoisted out of the per-call path).
    packed = jax.block_until_ready(prepare_params(params, input_dims))

    q = jax.block_until_ready(critic_forward(state, action, packed))
    assert q.shape == (batch, 1)

    # Tight check vs a reference that uses the same bf16/f32 mixed precision.
    q_bf = critic_reference_bf16(state, action, params)
    assert jnp.allclose(q, q_bf, atol=5e-3, rtol=5e-3)
    # Loose check vs the pure-f32 reference (bounds bf16 quantization error).
    q_f32 = critic_reference_f32(state, action, params)
    assert jnp.allclose(q, q_f32, atol=5e-2, rtol=5e-2)

    # Multi-tile / non-multiple batch sanity check (exercises grid + padding path).
    b2_ = 300
    state2 = jax.random.normal(k_s2, (b2_, input_dims), jnp.float32)
    action2 = jax.random.normal(k_a2, (b2_, n_actions), jnp.float32)
    q2 = jax.block_until_ready(critic_forward(state2, action2, packed))
    assert q2.shape == (b2_, 1)
    assert jnp.allclose(q2, critic_reference_bf16(state2, action2, params),
                        atol=5e-3, rtol=5e-3)

    # Large, tile-aligned batch (exercises >=2 parallel tiles + pad-free path).
    b3_ = 1024
    state3 = jax.random.normal(k_s2, (b3_, input_dims), jnp.float32)
    action3 = jax.random.normal(k_a2, (b3_, n_actions), jnp.float32)
    q3 = jax.block_until_ready(critic_forward(state3, action3, packed))
    assert q3.shape == (b3_, 1)
    assert jnp.allclose(q3, critic_reference_bf16(state3, action3, params),
                        atol=5e-3, rtol=5e-3)

    print("KERNEL_OK")
</pallas_src>

<mosaic_0001>
module attributes {stable_mosaic.version = 11 : i64} {
  func.func @critic_kernel(%arg0: i32, %arg1: memref<16x32xbf16, #tpu.memory_space<vmem>>, %arg2: memref<16x8xbf16, #tpu.memory_space<vmem>>, %arg3: memref<32x256xbf16, #tpu.memory_space<vmem>>, %arg4: memref<8x256xbf16, #tpu.memory_space<vmem>>, %arg5: memref<1x256xf32, #tpu.memory_space<vmem>>, %arg6: memref<256x256xbf16, #tpu.memory_space<vmem>>, %arg7: memref<1x256xf32, #tpu.memory_space<vmem>>, %arg8: memref<256x256xbf16, #tpu.memory_space<vmem>>, %arg9: memref<1x256xf32, #tpu.memory_space<vmem>>, %arg10: memref<256x8xbf16, #tpu.memory_space<vmem>>, %arg11: memref<1x8xf32, #tpu.memory_space<vmem>>, %arg12: memref<16x8xf32, #tpu.memory_space<vmem>>) attributes {dimension_semantics = [#tpu.dimension_semantics<parallel>], iteration_bounds = array<i64: 1>, scalar_prefetch = 0 : i64, scratch_operands = 0 : i64, tpu.core_type = #tpu.core_type<tc>, window_params = [{transform_indices = @transform_0, window_bounds = array<i64: 16, 32>}, {transform_indices = @transform_1, window_bounds = array<i64: 16, 8>}, {pipeline_mode = #tpu.pipeline_mode<synchronous>, transform_indices = @transform_2, window_bounds = array<i64: 32, 256>}, {pipeline_mode = #tpu.pipeline_mode<synchronous>, transform_indices = @transform_3, window_bounds = array<i64: 8, 256>}, {pipeline_mode = #tpu.pipeline_mode<synchronous>, transform_indices = @transform_4, window_bounds = array<i64: 1, 256>}, {pipeline_mode = #tpu.pipeline_mode<synchronous>, transform_indices = @transform_5, window_bounds = array<i64: 256, 256>}, {pipeline_mode = #tpu.pipeline_mode<synchronous>, transform_indices = @transform_6, window_bounds = array<i64: 1, 256>}, {pipeline_mode = #tpu.pipeline_mode<synchronous>, transform_indices = @transform_7, window_bounds = array<i64: 256, 256>}, {pipeline_mode = #tpu.pipeline_mode<synchronous>, transform_indices = @transform_8, window_bounds = array<i64: 1, 256>}, {pipeline_mode = #tpu.pipeline_mode<synchronous>, transform_indices = @transform_9, window_bounds = array<i64: 256, 8>}, {pipeline_mode = #tpu.pipeline_mode<synchronous>, transform_indices = @transform_10, window_bounds = array<i64: 1, 8>}, {transform_indices = @transform_11, window_bounds = array<i64: 16, 8>}]} {
    %c0 = arith.constant 0 : index
    %c0_0 = arith.constant 0 : index
    %0 = vector.load %arg1[%c0, %c0_0] : memref<16x32xbf16, #tpu.memory_space<vmem>>, vector<16x32xbf16>
    %c0_1 = arith.constant 0 : index
    %c0_2 = arith.constant 0 : index
    %1 = vector.load %arg3[%c0_1, %c0_2] : memref<32x256xbf16, #tpu.memory_space<vmem>>, vector<32x256xbf16>
    %cst = arith.constant dense<0.000000e+00> : vector<16x256xf32>
    %2 = tpu.matmul %0, %1, %cst {dimension_numbers = #tpu.dot_dimension_numbers<[1], [0], [0], [1], [0, 0, 1, 1], [], []>} : vector<16x32xbf16>, vector<32x256xbf16>, vector<16x256xf32> -> vector<16x256xf32>
    %c0_3 = arith.constant 0 : index
    %c0_4 = arith.constant 0 : index
    %3 = vector.load %arg2[%c0_3, %c0_4] : memref<16x8xbf16, #tpu.memory_space<vmem>>, vector<16x8xbf16>
    %c0_5 = arith.constant 0 : index
    %c0_6 = arith.constant 0 : index
    %4 = vector.load %arg4[%c0_5, %c0_6] : memref<8x256xbf16, #tpu.memory_space<vmem>>, vector<8x256xbf16>
    %cst_7 = arith.constant dense<0.000000e+00> : vector<16x256xf32>
    %5 = tpu.matmul %3, %4, %cst_7 {dimension_numbers = #tpu.dot_dimension_numbers<[1], [0], [0], [1], [0, 0, 1, 1], [], []>} : vector<16x8xbf16>, vector<8x256xbf16>, vector<16x256xf32> -> vector<16x256xf32>
    %6 = arith.addf %2, %5 : vector<16x256xf32>
    %c0_8 = arith.constant 0 : index
    %c0_9 = arith.constant 0 : index
    %7 = vector.load %arg5[%c0_8, %c0_9] : memref<1x256xf32, #tpu.memory_space<vmem>>, vector<1x256xf32>
    %8 = vector.broadcast %7 : vector<1x256xf32> to vector<16x256xf32>
    %9 = arith.addf %6, %8 : vector<16x256xf32>
    %cst_10 = arith.constant 0.000000e+00 : f32
    %10 = vector.broadcast %cst_10 : f32 to vector<16x256xf32>
    %11 = arith.maximumf %9, %10 : vector<16x256xf32>
    %12 = arith.truncf %11 : vector<16x256xf32> to vector<16x256xbf16>
    %c0_11 = arith.constant 0 : index
    %c0_12 = arith.constant 0 : index
    %13 = vector.load %arg6[%c0_11, %c0_12] : memref<256x256xbf16, #tpu.memory_space<vmem>>, vector<256x256xbf16>
    %cst_13 = arith.constant dense<0.000000e+00> : vector<16x256xf32>
    %14 = tpu.matmul %12, %13, %cst_13 {dimension_numbers = #tpu.dot_dimension_numbers<[1], [0], [0], [1], [0, 0, 1, 1], [], []>} : vector<16x256xbf16>, vector<256x256xbf16>, vector<16x256xf32> -> vector<16x256xf32>
    %c0_14 = arith.constant 0 : index
    %c0_15 = arith.constant 0 : index
    %15 = vector.load %arg7[%c0_14, %c0_15] : memref<1x256xf32, #tpu.memory_space<vmem>>, vector<1x256xf32>
    %16 = vector.broadcast %15 : vector<1x256xf32> to vector<16x256xf32>
    %17 = arith.addf %14, %16 : vector<16x256xf32>
    %cst_16 = arith.constant 0.000000e+00 : f32
    %18 = vector.broadcast %cst_16 : f32 to vector<16x256xf32>
    %19 = arith.maximumf %17, %18 : vector<16x256xf32>
    %20 = arith.truncf %19 : vector<16x256xf32> to vector<16x256xbf16>
    %c0_17 = arith.constant 0 : index
    %c0_18 = arith.constant 0 : index
    %21 = vector.load %arg8[%c0_17, %c0_18] : memref<256x256xbf16, #tpu.memory_space<vmem>>, vector<256x256xbf16>
    %cst_19 = arith.constant dense<0.000000e+00> : vector<16x256xf32>
    %22 = tpu.matmul %20, %21, %cst_19 {dimension_numbers = #tpu.dot_dimension_numbers<[1], [0], [0], [1], [0, 0, 1, 1], [], []>} : vector<16x256xbf16>, vector<256x256xbf16>, vector<16x256xf32> -> vector<16x256xf32>
    %c0_20 = arith.constant 0 : index
    %c0_21 = arith.constant 0 : index
    %23 = vector.load %arg9[%c0_20, %c0_21] : memref<1x256xf32, #tpu.memory_space<vmem>>, vector<1x256xf32>
    %24 = vector.broadcast %23 : vector<1x256xf32> to vector<16x256xf32>
    %25 = arith.addf %22, %24 : vector<16x256xf32>
    %cst_22 = arith.constant 0.000000e+00 : f32
    %26 = vector.broadcast %cst_22 : f32 to vector<16x256xf32>
    %27 = arith.maximumf %25, %26 : vector<16x256xf32>
    %28 = arith.truncf %27 : vector<16x256xf32> to vector<16x256xbf16>
    %c0_23 = arith.constant 0 : index
    %c0_24 = arith.constant 0 : index
    %29 = vector.load %arg10[%c0_23, %c0_24] : memref<256x8xbf16, #tpu.memory_space<vmem>>, vector<256x8xbf16>
    %cst_25 = arith.constant dense<0.000000e+00> : vector<16x8xf32>
    %30 = tpu.matmul %28, %29, %cst_25 {dimension_numbers = #tpu.dot_dimension_numbers<[1], [0], [0], [1], [0, 0, 1, 1], [], []>} : vector<16x256xbf16>, vector<256x8xbf16>, vector<16x8xf32> -> vector<16x8xf32>
    %c0_26 = arith.constant 0 : index
    %c0_27 = arith.constant 0 : index
    %31 = vector.load %arg11[%c0_26, %c0_27] : memref<1x8xf32, #tpu.memory_space<vmem>>, vector<1x8xf32>
    %32 = vector.broadcast %31 : vector<1x8xf32> to vector<16x8xf32>
    %33 = arith.addf %30, %32 : vector<16x8xf32>
    %c0_28 = arith.constant 0 : index
    %c0_29 = arith.constant 0 : index
    %34 = vector.load %arg12[%c0_28, %c0_29] : memref<16x8xf32, #tpu.memory_space<vmem>>, vector<16x8xf32>
    tpu.vector_store %arg12[%c0_28, %c0_29], %33 {strides = array<i32>} : memref<16x8xf32, #tpu.memory_space<vmem>>, vector<16x8xf32>,
    return
  }
  func.func @transform_0(%arg0: i32) -> (i32, i32) {
    %c0_i32 = arith.constant 0 : i32
    %c0_i32_0 = arith.constant 0 : i32
    return %arg0, %c0_i32 : i32, i32
  }
  func.func @transform_1(%arg0: i32) -> (i32, i32) {
    %c0_i32 = arith.constant 0 : i32
    %c0_i32_0 = arith.constant 0 : i32
    return %arg0, %c0_i32 : i32, i32
  }
  func.func @transform_2(%arg0: i32) -> (i32, i32) {
    %c0_i32 = arith.constant 0 : i32
    %c0_i32_0 = arith.constant 0 : i32
    %c0_i32_1 = arith.constant 0 : i32
    return %c0_i32, %c0_i32_0 : i32, i32
  }
  func.func @transform_3(%arg0: i32) -> (i32, i32) {
    %c0_i32 = arith.constant 0 : i32
    %c0_i32_0 = arith.constant 0 : i32
    %c0_i32_1 = arith.constant 0 : i32
    return %c0_i32, %c0_i32_0 : i32, i32
  }
  func.func @transform_4(%arg0: i32) -> (i32, i32) {
    %c0_i32 = arith.constant 0 : i32
    %c0_i32_0 = arith.constant 0 : i32
    %c0_i32_1 = arith.constant 0 : i32
    return %c0_i32, %c0_i32_0 : i32, i32
  }
  func.func @transform_5(%arg0: i32) -> (i32, i32) {
    %c0_i32 = arith.constant 0 : i32
    %c0_i32_0 = arith.constant 0 : i32
    %c0_i32_1 = arith.constant 0 : i32
    return %c0_i32, %c0_i32_0 : i32, i32
  }
  func.func @transform_6(%arg0: i32) -> (i32, i32) {
    %c0_i32 = arith.constant 0 : i32
    %c0_i32_0 = arith.constant 0 : i32
    %c0_i32_1 = arith.constant 0 : i32
    return %c0_i32, %c0_i32_0 : i32, i32
  }
  func.func @transform_7(%arg0: i32) -> (i32, i32) {
    %c0_i32 = arith.constant 0 : i32
    %c0_i32_0 = arith.constant 0 : i32
    %c0_i32_1 = arith.constant 0 : i32
    return %c0_i32, %c0_i32_0 : i32, i32
  }
  func.func @transform_8(%arg0: i32) -> (i32, i32) {
    %c0_i32 = arith.constant 0 : i32
    %c0_i32_0 = arith.constant 0 : i32
    %c0_i32_1 = arith.constant 0 : i32
    return %c0_i32, %c0_i32_0 : i32, i32
  }
  func.func @transform_9(%arg0: i32) -> (i32, i32) {
    %c0_i32 = arith.constant 0 : i32
    %c0_i32_0 = arith.constant 0 : i32
    %c0_i32_1 = arith.constant 0 : i32
    return %c0_i32, %c0_i32_0 : i32, i32
  }
  func.func @transform_10(%arg0: i32) -> (i32, i32) {
    %c0_i32 = arith.constant 0 : i32
    %c0_i32_0 = arith.constant 0 : i32
    %c0_i32_1 = arith.constant 0 : i32
    return %c0_i32, %c0_i32_0 : i32, i32
  }
  func.func @transform_11(%arg0: i32) -> (i32, i32) {
    %c0_i32 = arith.constant 0 : i32
    %c0_i32_0 = arith.constant 0 : i32
    return %arg0, %c0_i32 : i32, i32
  }
}

</mosaic_0001>

<llo_original>
// kernel: tpu_custom_call.1
$region0: #{tpu_custom_call.1}
  #allocation0 [shape = 'u32[]', space=smem, size = 0x4, offset = 0x4, fixed_abs, tag = 'smem constant byte address 0x4 - core index']
  #allocation1 [shape = 'u32[144,128]{1,0:T(1,128)}', space=vmem, size = 0x12000, scoped, tag = 'internal scratch']
  %s0 = inlined_call_operand.vmem [shape: bf16[16,32], index: 0, kind: input, shape index: {}]
  %s1 = inlined_call_operand.vmem [shape: bf16[16,8], index: 1, kind: input, shape index: {}]
  %s2 = inlined_call_operand.vmem [shape: bf16[32,256], index: 2, kind: input, shape index: {}]
  %s3 = inlined_call_operand.vmem [shape: bf16[8,256], index: 3, kind: input, shape index: {}]
  %s4 = inlined_call_operand.vmem [shape: f32[1,256], index: 4, kind: input, shape index: {}]
  %s5 = inlined_call_operand.hbm [shape: bf16[256,256], index: 5, kind: input, shape index: {}]
  %s6 = inlined_call_operand.vmem [shape: f32[1,256], index: 6, kind: input, shape index: {}]
  %s7 = inlined_call_operand.hbm [shape: bf16[256,256], index: 7, kind: input, shape index: {}]
  %s8 = inlined_call_operand.vmem [shape: f32[1,256], index: 8, kind: input, shape index: {}]
  %s9 = inlined_call_operand.vmem [shape: bf16[256,8], index: 9, kind: input, shape index: {}]
  %s10 = inlined_call_operand.vmem [shape: f32[1,8], index: 10, kind: input, shape index: {}]
  %s11 = inlined_call_operand.vmem [shape: f32[16,8], index: 11, kind: output, shape index: {}]
  %s12 = sld [smem:[#allocation0]]
  $region62: #{tpu_custom_call.1} parent=0
    _
  %s14 = ssub.s32 1, %s12
  %s15 = scalar_select 0, %s14, %s12
  $region1: #{tpu_custom_call.1} parent=0
    #allocation2 [shape = 'u8[131072]{0}', space=vmem, size = 0x20000, scoped, tag = 'input window, operand 5, single buffered']
    #allocation3 [shape = 's32[1]{0}', space=sflag, size = 0x4, scoped, tag = 'scoped memory for tpu_custom_call.1']
    #allocation4 [shape = 'u8[131072]{0}', space=vmem, size = 0x20000, scoped, tag = 'input window, operand 7, single buffered']
    #allocation5 [shape = 's32[1]{0}', space=sflag, size = 0x4, scoped, tag = 'scoped memory for tpu_custom_call.1']
    %16 = vsyncpa [#allocation3], 0
    %17 = vsyncpa [#allocation5], 0
    // Predicated region
    $region2: #{tpu_custom_call.1} parent=1 // pred_check
      _
    $region3: #{tpu_custom_call.1} parent=1 // pred_check_branch
      %19 = sbr.rel (0) target = $region5
    $region4: #{tpu_custom_call.1} parent=1 // pred_region
      _
    $region5: #{tpu_custom_call.1} parent=1 // pred_fallthru
      _
    // Predicated region
    $region6: #{tpu_custom_call.1} parent=1 // pred_check
      _
    $region7: #{tpu_custom_call.1} parent=1 // pred_check_branch
      %21 = sbr.rel (0) target = $region9
    $region8: #{tpu_custom_call.1} parent=1 // pred_region
      _
    $region9: #{tpu_custom_call.1} parent=1 // pred_fallthru
      _
    // Predicated region
    $region10: #{tpu_custom_call.1} parent=1 // pred_check
      _
    $region11: #{tpu_custom_call.1} parent=1 // pred_check_branch
      %23 = sbr.rel (0) target = $region13
    $region12: #{tpu_custom_call.1} parent=1 // pred_region
      _
    $region13: #{tpu_custom_call.1} parent=1 // pred_fallthru
      _
    // Predicated region
    $region14: #{tpu_custom_call.1} parent=1 // pred_check
      _
    $region15: #{tpu_custom_call.1} parent=1 // pred_check_branch
      %25 = sbr.rel (0) target = $region17
    $region16: #{tpu_custom_call.1} parent=1 // pred_region
      _
    $region17: #{tpu_custom_call.1} parent=1 // pred_fallthru
      _
    // Predicated region
    $region18: #{tpu_custom_call.1} parent=1 // pred_check
      _
    $region19: #{tpu_custom_call.1} parent=1 // pred_check_branch
      %27 = sbr.rel (0) target = $region21
    $region20: #{tpu_custom_call.1} parent=1 // pred_region
      _
    $region21: #{tpu_custom_call.1} parent=1 // pred_fallthru
      _
    // Predicated region
    $region22: #{tpu_custom_call.1} parent=1 // pred_check
      _
    $region23: #{tpu_custom_call.1} parent=1 // pred_check_branch
      %29 = sbr.rel (0) target = $region25
    $region24: #{tpu_custom_call.1} parent=1 // pred_region
      %s31 = ssub.s32 4096, 4096
      %32 = vsyncadd [#allocation3], %s31
      %s33 = sshll.u32 [#allocation2], 4
      %s34 = int_to_ptr.vmem [resolvable:$true] %s33
      %39 = dma.hbm_to_vmem [thread:$0]  %s5, 4096, %s34, [#allocation3], 128, 128, 8
    $region25: #{tpu_custom_call.1} parent=1 // pred_fallthru
      _
    // Predicated region
    $region26: #{tpu_custom_call.1} parent=1 // pred_check
      _
    $region27: #{tpu_custom_call.1} parent=1 // pred_check_branch
      %41 = sbr.rel (0) target = $region29
    $region28: #{tpu_custom_call.1} parent=1 // pred_region
      _
    $region29: #{tpu_custom_call.1} parent=1 // pred_fallthru
      _
    // Predicated region
    $region30: #{tpu_custom_call.1} parent=1 // pred_check
      _
    $region31: #{tpu_custom_call.1} parent=1 // pred_check_branch
      %43 = sbr.rel (0) target = $region33
    $region32: #{tpu_custom_call.1} parent=1 // pred_region
      %s45 = ssub.s32 4096, 4096
      %46 = vsyncadd [#allocation5], %s45
      %s47 = sshll.u32 [#allocation4], 4
      %s48 = int_to_ptr.vmem [resolvable:$true] %s47
      %53 = dma.hbm_to_vmem [thread:$0]  %s7, 4096, %s48, [#allocation5], 128, 128, 8
    $region33: #{tpu_custom_call.1} parent=1 // pred_fallthru
      _
    // Predicated region
    $region34: #{tpu_custom_call.1} parent=1 // pred_check
      _
    $region35: #{tpu_custom_call.1} parent=1 // pred_check_branch
      %55 = sbr.rel (0) target = $region37
    $region36: #{tpu_custom_call.1} parent=1 // pred_region
      _
    $region37: #{tpu_custom_call.1} parent=1 // pred_fallthru
      _
    // Predicated region
    $region38: #{tpu_custom_call.1} parent=1 // pred_check
      _
    $region39: #{tpu_custom_call.1} parent=1 // pred_check_branch
      %57 = sbr.rel (0) target = $region41
    $region40: #{tpu_custom_call.1} parent=1 // pred_region
      _
    $region41: #{tpu_custom_call.1} parent=1 // pred_fallthru
      _
    // Predicated region
    $region42: #{tpu_custom_call.1} parent=1 // pred_check
      _
    $region43: #{tpu_custom_call.1} parent=1 // pred_check_branch
      %59 = sbr.rel (0) target = $region45
    $region44: #{tpu_custom_call.1} parent=1 // pred_region
      _
    $region45: #{tpu_custom_call.1} parent=1 // pred_fallthru
      _
    // Predicated region
    $region46: #{tpu_custom_call.1} parent=1 // pred_check
      _
    $region47: #{tpu_custom_call.1} parent=1 // pred_check_branch
      %61 = sbr.rel (0) target = $region49
    $region48: #{tpu_custom_call.1} parent=1 // pred_region
      %62 = dma.done [#allocation3], 4096
    $region49: #{tpu_custom_call.1} parent=1 // pred_fallthru
      _
    // Predicated region
    $region50: #{tpu_custom_call.1} parent=1 // pred_check
      _
    $region51: #{tpu_custom_call.1} parent=1 // pred_check_branch
      %64 = sbr.rel (0) target = $region53
    $region52: #{tpu_custom_call.1} parent=1 // pred_region
      %65 = dma.done [#allocation5], 4096
    $region53: #{tpu_custom_call.1} parent=1 // pred_fallthru
      _
    %v67 = vld [vmem:[%s0] sm:$0xf]
    %v68 = vld [vmem:[%s0 + $0x4] sm:$0xf]
    %v69 = vld [vmem:[%s2] sm:$0xff]
    %v70 = vld [vmem:[%s2 + $0x8] sm:$0xff]
    %v71 = vld [vmem:[%s2 + $0x10] sm:$0xff]
    %v72 = vld [vmem:[%s2 + $0x18] sm:$0xff]
    %v73 = vld [vmem:[%s1] sm:$0xf]
    %v74 = vld [vmem:[%s1 + $0x4] sm:$0xf]
    %v75 = vld [vmem:[%s3] sm:$0xff]
    %v78 = vunpack.c.l.b16 %v73
    %v79 = vunpack.c.l.b16 %v74
    %v80 = vpack.c.b16 %v79, %v78
    %v82 = vunpack.c.l.b16 %v75
    %v83 = vunpack.c.h.b16 %v75
    %v84 = vpack.c.b16 %v82, %v82
    %v85 = vpack.c.b16 %v83, %v83
    %vm86 = vcmask 64512
    %v88 = vsel %vm86, %v80, 0
    %vm90 = vcmask 1043456
    %v92 = vsel %vm90, %v84, 0
    %v95 = vsel %vm90, %v85, 0
    %97 = vmatprep.subr.bf16.mxu0 %v95
    %98 = vmatpush1.bf16.msra.mxu0 %v92
    %99 = vmatprep.subr.bf16.mxu0 0
    %100 = vmatpush1.bf16.msra.mxu0 0
    %101 = vmatprep.subr.bf16.mxu0 0
    %102 = vmatpush1.bf16.msra.mxu0 0
    %103 = vmatprep.subr.bf16.mxu0 0
    %104 = vmatpush1.bf16.msra.mxu0 0
    %105 = vmatprep.subr.bf16.mxu0 0
    %106 = vmatpush1.bf16.msra.mxu0 0
    %107 = vmatprep.subr.bf16.mxu0 0
    %108 = vmatpush1.bf16.msra.mxu0 0
    %109 = vmatprep.subr.bf16.mxu0 0
    %110 = vmatpush1.bf16.msra.mxu0 0
    %111 = vmatprep.subr.bf16.mxu0 0
    %112 = vmatpush1.bf16.msra.mxu0 0
    %113 = vmatprep.subr.bf16.mxu0 0
    %114 = vmatpush1.bf16.msra.mxu0 0
    %115 = vmatprep.subr.bf16.mxu0 0
    %116 = vmatpush1.bf16.msra.mxu0 0
    %117 = vmatprep.subr.bf16.mxu0 0
    %118 = vmatpush1.bf16.msra.mxu0 0
    %119 = vmatprep.subr.bf16.mxu0 0
    %120 = vmatpush1.bf16.msra.mxu0 0
    %121 = vmatprep.subr.bf16.mxu0 0
    %122 = vmatpush1.bf16.msra.mxu0 0
    %123 = vmatprep.subr.bf16.mxu0 0
    %124 = vmatpush1.bf16.msra.mxu0 0
    %125 = vmatprep.subr.bf16.mxu0 0
    %126 = vmatpush1.bf16.msra.mxu0 0
    %127 = vmatprep.subr.bf16.mxu0 0
    %128 = vmatpush1.bf16.msra.mxu0 0
    %129 = vmatprep.mubr.bf16.mxu0 0
    %130 = vmatmul.mubr.bf16.gmra.mrb[0].mxu0 %v88
    %v131 = vpop.f32.mrb[0].mxu0
    %v132 = vadd.f32 0.0, %v131
    %v133 = vpop.f32.mrb[0].mxu0
    %v134 = vadd.f32 0.0, %v133
    %v135 = vpop.f32.mrb[0].mxu0
    %v136 = vadd.f32 0.0, %v135
    %v137 = vpop.f32.mrb[0].mxu0
    %v138 = vadd.f32 0.0, %v137
    %139 = vdwg.mxu0
    %v142 = vunpack.c.l.b16 %v67
    %v143 = vunpack.c.l.b16 %v68
    %v144 = vpack.c.b16 %v143, %v142
    %v149 = vunpack.c.l.b16 %v69
    %v150 = vunpack.c.h.b16 %v69
    %v151 = vunpack.c.l.b16 %v70
    %v152 = vunpack.c.h.b16 %v70
    %v153 = vunpack.c.l.b16 %v71
    %v154 = vunpack.c.h.b16 %v71
    %v155 = vunpack.c.l.b16 %v72
    %v156 = vunpack.c.h.b16 %v72
    %v157 = vpack.c.b16 %v151, %v149
    %v158 = vpack.c.b16 %v152, %v150
    %v159 = vpack.c.b16 %v155, %v153
    %v160 = vpack.c.b16 %v156, %v154
    %vm165 = vcmask 261120
    %v167 = vsel %vm165, %v144, 0
    %169 = vmatprep.subr.bf16.mxu0 %v158
    %170 = vmatpush1.bf16.msra.mxu0 %v157
    %171 = vmatprep.subr.bf16.mxu0 %v160
    %172 = vmatpush1.bf16.msra.mxu0 %v159
    %173 = vmatprep.subr.bf16.mxu0 0
    %174 = vmatpush1.bf16.msra.mxu0 0
    %175 = vmatprep.subr.bf16.mxu0 0
    %176 = vmatpush1.bf16.msra.mxu0 0
    %177 = vmatprep.subr.bf16.mxu0 0
    %178 = vmatpush1.bf16.msra.mxu0 0
    %179 = vmatprep.subr.bf16.mxu0 0
    %180 = vmatpush1.bf16.msra.mxu0 0
    %181 = vmatprep.subr.bf16.mxu0 0
    %182 = vmatpush1.bf16.msra.mxu0 0
    %183 = vmatprep.subr.bf16.mxu0 0
    %184 = vmatpush1.bf16.msra.mxu0 0
    %185 = vmatprep.subr.bf16.mxu0 0
    %186 = vmatpush1.bf16.msra.mxu0 0
    %187 = vmatprep.subr.bf16.mxu0 0
    %188 = vmatpush1.bf16.msra.mxu0 0
    %189 = vmatprep.subr.bf16.mxu0 0
    %190 = vmatpush1.bf16.msra.mxu0 0
    %191 = vmatprep.subr.bf16.mxu0 0
    %192 = vmatpush1.bf16.msra.mxu0 0
    %193 = vmatprep.subr.bf16.mxu0 0
    %194 = vmatpush1.bf16.msra.mxu0 0
    %195 = vmatprep.subr.bf16.mxu0 0
    %196 = vmatpush1.bf16.msra.mxu0 0
    %197 = vmatprep.subr.bf16.mxu0 0
    %198 = vmatpush1.bf16.msra.mxu0 0
    %199 = vmatprep.subr.bf16.mxu0 0
    %200 = vmatpush1.bf16.msra.mxu0 0
    %201 = vmatprep.mubr.bf16.mxu0 0
    %202 = vmatmul.mubr.bf16.gmra.mrb[0].mxu0 %v167
    %v203 = vpop.f32.mrb[0].mxu0
    %v204 = vadd.f32 %v132, %v203
    %v205 = vpop.f32.mrb[0].mxu0
    %v206 = vadd.f32 %v134, %v205
    %v207 = vpop.f32.mrb[0].mxu0
    %v208 = vadd.f32 %v136, %v207
    %v209 = vpop.f32.mrb[0].mxu0
    %v210 = vadd.f32 %v138, %v209
    %211 = vdwg.mxu0
    %v212 = vld [vmem:[%s4] sm:$0x3]
    %v214 = vlaneseq
    %v215 = vshrl.u32 %v214, 7
    %v216 = vsub.s32 0, %v215
    %v217 = vrot.slane %v212, %v216
    %v218 = vlaneseq
    %v219 = vshrl.u32 %v218, 7
    %v220 = vsub.s32 1, %v219
    %v221 = vrot.slane %v212, %v220
    %v224 = vadd.f32 %v204, %v217
    %v225 = vadd.f32 %v206, %v221
    %v226 = vadd.f32 %v208, %v217
    %v227 = vadd.f32 %v210, %v221
    %v228 = vmax.f32 %v224, 0.0
    %v229 = vmax.f32 %v225, 0.0
    %v230 = vmax.f32 %v226, 0.0
    %v231 = vmax.f32 %v227, 0.0
    %v232 = vpack.c.bf16 %v230, %v228
    %v233 = vpack.c.bf16 %v231, %v229
    %v234 = vld [vmem:[#allocation2] sm:$0xff]
    %v235 = vld [vmem:[#allocation2 + $0x8] sm:$0xff]
    %v236 = vld [vmem:[#allocation2 + $0x10] sm:$0xff]
    %v237 = vld [vmem:[#allocation2 + $0x18] sm:$0xff]
    %v238 = vld [vmem:[#allocation2 + $0x20] sm:$0xff]
    %v239 = vld [vmem:[#allocation2 + $0x28] sm:$0xff]
    %v240 = vld [vmem:[#allocation2 + $0x30] sm:$0xff]
    %v241 = vld [vmem:[#allocation2 + $0x38] sm:$0xff]
    %v242 = vld [vmem:[#allocation2 + $0x40] sm:$0xff]
    %v243 = vld [vmem:[#allocation2 + $0x48] sm:$0xff]
    %v244 = vld [vmem:[#allocation2 + $0x50] sm:$0xff]
    %v245 = vld [vmem:[#allocation2 + $0x58] sm:$0xff]
    %v246 = vld [vmem:[#allocation2 + $0x60] sm:$0xff]
    %v247 = vld [vmem:[#allocation2 + $0x68] sm:$0xff]
    %v248 = vld [vmem:[#allocation2 + $0x70] sm:$0xff]
    %v249 = vld [vmem:[#allocation2 + $0x78] sm:$0xff]
    %v250 = vld [vmem:[#allocation2 + $0x80] sm:$0xff]
    %v251 = vld [vmem:[#allocation2 + $0x88] sm:$0xff]
    %v252 = vld [vmem:[#allocation2 + $0x90] sm:$0xff]
    %v253 = vld [vmem:[#allocation2 + $0x98] sm:$0xff]
    %v254 = vld [vmem:[#allocation2 + $0xa0] sm:$0xff]
    %v255 = vld [vmem:[#allocation2 + $0xa8] sm:$0xff]
    %v256 = vld [vmem:[#allocation2 + $0xb0] sm:$0xff]
    %v257 = vld [vmem:[#allocation2 + $0xb8] sm:$0xff]
    %v258 = vld [vmem:[#allocation2 + $0xc0] sm:$0xff]
    %v259 = vld [vmem:[#allocation2 + $0xc8] sm:$0xff]
    %v260 = vld [vmem:[#allocation2 + $0xd0] sm:$0xff]
    %v261 = vld [vmem:[#allocation2 + $0xd8] sm:$0xff]
    %v262 = vld [vmem:[#allocation2 + $0xe0] sm:$0xff]
    %v263 = vld [vmem:[#allocation2 + $0xe8] sm:$0xff]
    %v264 = vld [vmem:[#allocation2 + $0xf0] sm:$0xff]
    %v265 = vld [vmem:[#allocation2 + $0xf8] sm:$0xff]
    %v266 = vld [vmem:[%s6] sm:$0x3]
    %v268 = vlaneseq
    %v269 = vshrl.u32 %v268, 7
    %v270 = vsub.s32 0, %v269
    %v271 = vrot.slane %v266, %v270
    %v272 = vlaneseq
    %v273 = vshrl.u32 %v272, 7
    %v274 = vsub.s32 1, %v273
    %v275 = vrot.slane %v266, %v274
    %v310 = vunpack.c.l.b16 %v234
    %v311 = vunpack.c.h.b16 %v234
    %v312 = vunpack.c.l.b16 %v235
    %v313 = vunpack.c.h.b16 %v235
    %v314 = vunpack.c.l.b16 %v236
    %v315 = vunpack.c.h.b16 %v236
    %v316 = vunpack.c.l.b16 %v237
    %v317 = vunpack.c.h.b16 %v237
    %v318 = vunpack.c.l.b16 %v238
    %v319 = vunpack.c.h.b16 %v238
    %v320 = vunpack.c.l.b16 %v239
    %v321 = vunpack.c.h.b16 %v239
    %v322 = vunpack.c.l.b16 %v240
    %v323 = vunpack.c.h.b16 %v240
    %v324 = vunpack.c.l.b16 %v241
    %v325 = vunpack.c.h.b16 %v241
    %v326 = vunpack.c.l.b16 %v242
    %v327 = vunpack.c.h.b16 %v242
    %v328 = vunpack.c.l.b16 %v243
    %v329 = vunpack.c.h.b16 %v243
    %v330 = vunpack.c.l.b16 %v244
    %v331 = vunpack.c.h.b16 %v244
    %v332 = vunpack.c.l.b16 %v245
    %v333 = vunpack.c.h.b16 %v245
    %v334 = vunpack.c.l.b16 %v246
    %v335 = vunpack.c.h.b16 %v246
    %v336 = vunpack.c.l.b16 %v247
    %v337 = vunpack.c.h.b16 %v247
    %v338 = vunpack.c.l.b16 %v248
    %v339 = vunpack.c.h.b16 %v248
    %v340 = vunpack.c.l.b16 %v249
    %v341 = vunpack.c.h.b16 %v249
    %v342 = vunpack.c.l.b16 %v250
    %v343 = vunpack.c.h.b16 %v250
    %v344 = vunpack.c.l.b16 %v251
    %v345 = vunpack.c.h.b16 %v251
    %v346 = vunpack.c.l.b16 %v252
    %v347 = vunpack.c.h.b16 %v252
    %v348 = vunpack.c.l.b16 %v253
    %v349 = vunpack.c.h.b16 %v253
    %v350 = vunpack.c.l.b16 %v254
    %v351 = vunpack.c.h.b16 %v254
    %v352 = vunpack.c.l.b16 %v255
    %v353 = vunpack.c.h.b16 %v255
    %v354 = vunpack.c.l.b16 %v256
    %v355 = vunpack.c.h.b16 %v256
    %v356 = vunpack.c.l.b16 %v257
    %v357 = vunpack.c.h.b16 %v257
    %v358 = vunpack.c.l.b16 %v258
    %v359 = vunpack.c.h.b16 %v258
    %v360 = vunpack.c.l.b16 %v259
    %v361 = vunpack.c.h.b16 %v259
    %v362 = vunpack.c.l.b16 %v260
    %v363 = vunpack.c.h.b16 %v260
    %v364 = vunpack.c.l.b16 %v261
    %v365 = vunpack.c.h.b16 %v261
    %v366 = vunpack.c.l.b16 %v262
    %v367 = vunpack.c.h.b16 %v262
    %v368 = vunpack.c.l.b16 %v263
    %v369 = vunpack.c.h.b16 %v263
    %v370 = vunpack.c.l.b16 %v264
    %v371 = vunpack.c.h.b16 %v264
    %v372 = vunpack.c.l.b16 %v265
    %v373 = vunpack.c.h.b16 %v265
    %v374 = vpack.c.b16 %v312, %v310
    %v375 = vpack.c.b16 %v313, %v311
    %v376 = vpack.c.b16 %v316, %v314
    %v377 = vpack.c.b16 %v317, %v315
    %v378 = vpack.c.b16 %v320, %v318
    %v379 = vpack.c.b16 %v321, %v319
    %v380 = vpack.c.b16 %v324, %v322
    %v381 = vpack.c.b16 %v325, %v323
    %v382 = vpack.c.b16 %v328, %v326
    %v383 = vpack.c.b16 %v329, %v327
    %v384 = vpack.c.b16 %v332, %v330
    %v385 = vpack.c.b16 %v333, %v331
    %v386 = vpack.c.b16 %v336, %v334
    %v387 = vpack.c.b16 %v337, %v335
    %v388 = vpack.c.b16 %v340, %v338
    %v389 = vpack.c.b16 %v341, %v339
    %v390 = vpack.c.b16 %v344, %v342
    %v391 = vpack.c.b16 %v345, %v343
    %v392 = vpack.c.b16 %v348, %v346
    %v393 = vpack.c.b16 %v349, %v347
    %v394 = vpack.c.b16 %v352, %v350
    %v395 = vpack.c.b16 %v353, %v351
    %v396 = vpack.c.b16 %v356, %v354
    %v397 = vpack.c.b16 %v357, %v355
    %v398 = vpack.c.b16 %v360, %v358
    %v399 = vpack.c.b16 %v361, %v359
    %v400 = vpack.c.b16 %v364, %v362
    %v401 = vpack.c.b16 %v365, %v363
    %v402 = vpack.c.b16 %v368, %v366
    %v403 = vpack.c.b16 %v369, %v367
    %v404 = vpack.c.b16 %v372, %v370
    %v405 = vpack.c.b16 %v373, %v371
    %438 = vmatprep.subr.bf16.mxu0 %v375
    %439 = vmatpush1.bf16.msra.mxu0 %v374
    %440 = vmatprep.subr.bf16.mxu0 %v377
    %441 = vmatpush1.bf16.msra.mxu0 %v376
    %442 = vmatprep.subr.bf16.mxu0 %v379
    %443 = vmatpush1.bf16.msra.mxu0 %v378
    %444 = vmatprep.subr.bf16.mxu0 %v381
    %445 = vmatpush1.bf16.msra.mxu0 %v380
    %446 = vmatprep.subr.bf16.mxu0 %v383
    %447 = vmatpush1.bf16.msra.mxu0 %v382
    %448 = vmatprep.subr.bf16.mxu0 %v385
    %449 = vmatpush1.bf16.msra.mxu0 %v384
    %450 = vmatprep.subr.bf16.mxu0 %v387
    %451 = vmatpush1.bf16.msra.mxu0 %v386
    %452 = vmatprep.subr.bf16.mxu0 %v389
    %453 = vmatpush1.bf16.msra.mxu0 %v388
    %454 = vmatprep.subr.bf16.mxu0 %v391
    %455 = vmatpush1.bf16.msra.mxu0 %v390
    %456 = vmatprep.subr.bf16.mxu0 %v393
    %457 = vmatpush1.bf16.msra.mxu0 %v392
    %458 = vmatprep.subr.bf16.mxu0 %v395
    %459 = vmatpush1.bf16.msra.mxu0 %v394
    %460 = vmatprep.subr.bf16.mxu0 %v397
    %461 = vmatpush1.bf16.msra.mxu0 %v396
    %462 = vmatprep.subr.bf16.mxu0 %v399
    %463 = vmatpush1.bf16.msra.mxu0 %v398
    %464 = vmatprep.subr.bf16.mxu0 %v401
    %465 = vmatpush1.bf16.msra.mxu0 %v400
    %466 = vmatprep.subr.bf16.mxu0 %v403
    %467 = vmatpush1.bf16.msra.mxu0 %v402
    %468 = vmatprep.subr.bf16.mxu0 %v405
    %469 = vmatpush1.bf16.msra.mxu0 %v404
    %470 = vmatprep.mubr.bf16.mxu0 %v233
    %471 = vmatmul.mubr.bf16.gmra.mrb[0].mxu0 %v232
    %v472 = vpop.f32.mrb[0].mxu0
    %v473 = vadd.f32 %v271, %v472
    %v474 = vpop.f32.mrb[0].mxu0
    %v475 = vadd.f32 %v275, %v474
    %v476 = vpop.f32.mrb[0].mxu0
    %v477 = vadd.f32 %v271, %v476
    %v478 = vpop.f32.mrb[0].mxu0
    %v479 = vadd.f32 %v275, %v478
    %480 = vdwg.mxu0
    %v481 = vmax.f32 %v473, 0.0
    %v482 = vmax.f32 %v475, 0.0
    %v483 = vmax.f32 %v477, 0.0
    %v484 = vmax.f32 %v479, 0.0
    %v485 = vpack.c.bf16 %v483, %v481
    %v486 = vpack.c.bf16 %v484, %v482
    %v487 = vld [vmem:[#allocation4] sm:$0xff]
    %v488 = vld [vmem:[#allocation4 + $0x8] sm:$0xff]
    %v489 = vld [vmem:[#allocation4 + $0x10] sm:$0xff]
    %v490 = vld [vmem:[#allocation4 + $0x18] sm:$0xff]
    %v491 = vld [vmem:[#allocation4 + $0x20] sm:$0xff]
    %v492 = vld [vmem:[#allocation4 + $0x28] sm:$0xff]
    %v493 = vld [vmem:[#allocation4 + $0x30] sm:$0xff]
    %v494 = vld [vmem:[#allocation4 + $0x38] sm:$0xff]
    %v495 = vld [vmem:[#allocation4 + $0x40] sm:$0xff]
    %v496 = vld [vmem:[#allocation4 + $0x48] sm:$0xff]
    %v497 = vld [vmem:[#allocation4 + $0x50] sm:$0xff]
    %v498 = vld [vmem:[#allocation4 + $0x58] sm:$0xff]
    %v499 = vld [vmem:[#allocation4 + $0x60] sm:$0xff]
    %v500 = vld [vmem:[#allocation4 + $0x68] sm:$0xff]
    %v501 = vld [vmem:[#allocation4 + $0x70] sm:$0xff]
    %v502 = vld [vmem:[#allocation4 + $0x78] sm:$0xff]
    %v503 = vld [vmem:[#allocation4 + $0x80] sm:$0xff]
    %v504 = vld [vmem:[#allocation4 + $0x88] sm:$0xff]
    %v505 = vld [vmem:[#allocation4 + $0x90] sm:$0xff]
    %v506 = vld [vmem:[#allocation4 + $0x98] sm:$0xff]
    %v507 = vld [vmem:[#allocation4 + $0xa0] sm:$0xff]
    %v508 = vld [vmem:[#allocation4 + $0xa8] sm:$0xff]
    %v509 = vld [vmem:[#allocation4 + $0xb0] sm:$0xff]
    %v510 = vld [vmem:[#allocation4 + $0xb8] sm:$0xff]
    %v511 = vld [vmem:[#allocation4 + $0xc0] sm:$0xff]
    %v512 = vld [vmem:[#allocation4 + $0xc8] sm:$0xff]
    %v513 = vld [vmem:[#allocation4 + $0xd0] sm:$0xff]
    %v514 = vld [vmem:[#allocation4 + $0xd8] sm:$0xff]
    %v515 = vld [vmem:[#allocation4 + $0xe0] sm:$0xff]
    %v516 = vld [vmem:[#allocation4 + $0xe8] sm:$0xff]
    %v517 = vld [vmem:[#allocation4 + $0xf0] sm:$0xff]
    %v518 = vld [vmem:[#allocation4 + $0xf8] sm:$0xff]
    %v519 = vld [vmem:[%s8] sm:$0x3]
    %v521 = vlaneseq
    %v522 = vshrl.u32 %v521, 7
    %v523 = vsub.s32 0, %v522
    %v524 = vrot.slane %v519, %v523
    %v525 = vlaneseq
    %v526 = vshrl.u32 %v525, 7
    %v527 = vsub.s32 1, %v526
    %v528 = vrot.slane %v519, %v527
    %v563 = vunpack.c.l.b16 %v487
    %v564 = vunpack.c.h.b16 %v487
    %v565 = vunpack.c.l.b16 %v488
    %v566 = vunpack.c.h.b16 %v488
    %v567 = vunpack.c.l.b16 %v489
    %v568 = vunpack.c.h.b16 %v489
    %v569 = vunpack.c.l.b16 %v490
    %v570 = vunpack.c.h.b16 %v490
    %v571 = vunpack.c.l.b16 %v491
    %v572 = vunpack.c.h.b16 %v491
    %v573 = vunpack.c.l.b16 %v492
    %v574 = vunpack.c.h.b16 %v492
    %v575 = vunpack.c.l.b16 %v493
    %v576 = vunpack.c.h.b16 %v493
    %v577 = vunpack.c.l.b16 %v494
    %v578 = vunpack.c.h.b16 %v494
    %v579 = vunpack.c.l.b16 %v495
    %v580 = vunpack.c.h.b16 %v495
    %v581 = vunpack.c.l.b16 %v496
    %v582 = vunpack.c.h.b16 %v496
    %v583 = vunpack.c.l.b16 %v497
    %v584 = vunpack.c.h.b16 %v497
    %v585 = vunpack.c.l.b16 %v498
    %v586 = vunpack.c.h.b16 %v498
    %v587 = vunpack.c.l.b16 %v499
    %v588 = vunpack.c.h.b16 %v499
    %v589 = vunpack.c.l.b16 %v500
    %v590 = vunpack.c.h.b16 %v500
    %v591 = vunpack.c.l.b16 %v501
    %v592 = vunpack.c.h.b16 %v501
    %v593 = vunpack.c.l.b16 %v502
    %v594 = vunpack.c.h.b16 %v502
    %v595 = vunpack.c.l.b16 %v503
    %v596 = vunpack.c.h.b16 %v503
    %v597 = vunpack.c.l.b16 %v504
    %v598 = vunpack.c.h.b16 %v504
    %v599 = vunpack.c.l.b16 %v505
    %v600 = vunpack.c.h.b16 %v505
    %v601 = vunpack.c.l.b16 %v506
    %v602 = vunpack.c.h.b16 %v506
    %v603 = vunpack.c.l.b16 %v507
    %v604 = vunpack.c.h.b16 %v507
    %v605 = vunpack.c.l.b16 %v508
    %v606 = vunpack.c.h.b16 %v508
    %v607 = vunpack.c.l.b16 %v509
    %v608 = vunpack.c.h.b16 %v509
    %v609 = vunpack.c.l.b16 %v510
    %v610 = vunpack.c.h.b16 %v510
    %v611 = vunpack.c.l.b16 %v511
    %v612 = vunpack.c.h.b16 %v511
    %v613 = vunpack.c.l.b16 %v512
    %v614 = vunpack.c.h.b16 %v512
    %v615 = vunpack.c.l.b16 %v513
    %v616 = vunpack.c.h.b16 %v513
    %v617 = vunpack.c.l.b16 %v514
    %v618 = vunpack.c.h.b16 %v514
    %v619 = vunpack.c.l.b16 %v515
    %v620 = vunpack.c.h.b16 %v515
    %v621 = vunpack.c.l.b16 %v516
    %v622 = vunpack.c.h.b16 %v516
    %v623 = vunpack.c.l.b16 %v517
    %v624 = vunpack.c.h.b16 %v517
    %v625 = vunpack.c.l.b16 %v518
    %v626 = vunpack.c.h.b16 %v518
    %v627 = vpack.c.b16 %v565, %v563
    %v628 = vpack.c.b16 %v566, %v564
    %v629 = vpack.c.b16 %v569, %v567
    %v630 = vpack.c.b16 %v570, %v568
    %v631 = vpack.c.b16 %v573, %v571
    %v632 = vpack.c.b16 %v574, %v572
    %v633 = vpack.c.b16 %v577, %v575
    %v634 = vpack.c.b16 %v578, %v576
    %v635 = vpack.c.b16 %v581, %v579
    %v636 = vpack.c.b16 %v582, %v580
    %v637 = vpack.c.b16 %v585, %v583
    %v638 = vpack.c.b16 %v586, %v584
    %v639 = vpack.c.b16 %v589, %v587
    %v640 = vpack.c.b16 %v590, %v588
    %v641 = vpack.c.b16 %v593, %v591
    %v642 = vpack.c.b16 %v594, %v592
    %v643 = vpack.c.b16 %v597, %v595
    %v644 = vpack.c.b16 %v598, %v596
    %v645 = vpack.c.b16 %v601, %v599
    %v646 = vpack.c.b16 %v602, %v600
    %v647 = vpack.c.b16 %v605, %v603
    %v648 = vpack.c.b16 %v606, %v604
    %v649 = vpack.c.b16 %v609, %v607
    %v650 = vpack.c.b16 %v610, %v608
    %v651 = vpack.c.b16 %v613, %v611
    %v652 = vpack.c.b16 %v614, %v612
    %v653 = vpack.c.b16 %v617, %v615
    %v654 = vpack.c.b16 %v618, %v616
    %v655 = vpack.c.b16 %v621, %v619
    %v656 = vpack.c.b16 %v622, %v620
    %v657 = vpack.c.b16 %v625, %v623
    %v658 = vpack.c.b16 %v626, %v624
    %691 = vmatprep.subr.bf16.mxu0 %v628
    %692 = vmatpush1.bf16.msra.mxu0 %v627
    %693 = vmatprep.subr.bf16.mxu0 %v630
    %694 = vmatpush1.bf16.msra.mxu0 %v629
    %695 = vmatprep.subr.bf16.mxu0 %v632
    %696 = vmatpush1.bf16.msra.mxu0 %v631
    %697 = vmatprep.subr.bf16.mxu0 %v634
    %698 = vmatpush1.bf16.msra.mxu0 %v633
    %699 = vmatprep.subr.bf16.mxu0 %v636
    %700 = vmatpush1.bf16.msra.mxu0 %v635
    %701 = vmatprep.subr.bf16.mxu0 %v638
    %702 = vmatpush1.bf16.msra.mxu0 %v637
    %703 = vmatprep.subr.bf16.mxu0 %v640
    %704 = vmatpush1.bf16.msra.mxu0 %v639
    %705 = vmatprep.subr.bf16.mxu0 %v642
    %706 = vmatpush1.bf16.msra.mxu0 %v641
    %707 = vmatprep.subr.bf16.mxu0 %v644
    %708 = vmatpush1.bf16.msra.mxu0 %v643
    %709 = vmatprep.subr.bf16.mxu0 %v646
    %710 = vmatpush1.bf16.msra.mxu0 %v645
    %711 = vmatprep.subr.bf16.mxu0 %v648
    %712 = vmatpush1.bf16.msra.mxu0 %v647
    %713 = vmatprep.subr.bf16.mxu0 %v650
    %714 = vmatpush1.bf16.msra.mxu0 %v649
    %715 = vmatprep.subr.bf16.mxu0 %v652
    %716 = vmatpush1.bf16.msra.mxu0 %v651
    %717 = vmatprep.subr.bf16.mxu0 %v654
    %718 = vmatpush1.bf16.msra.mxu0 %v653
    %719 = vmatprep.subr.bf16.mxu0 %v656
    %720 = vmatpush1.bf16.msra.mxu0 %v655
    %721 = vmatprep.subr.bf16.mxu0 %v658
    %722 = vmatpush1.bf16.msra.mxu0 %v657
    %723 = vmatprep.mubr.bf16.mxu0 %v486
    %724 = vmatmul.mubr.bf16.gmra.mrb[0].mxu0 %v485
    %v725 = vpop.f32.mrb[0].mxu0
    %v726 = vadd.f32 %v524, %v725
    %v727 = vpop.f32.mrb[0].mxu0
    %v728 = vadd.f32 %v528, %v727
    %v729 = vpop.f32.mrb[0].mxu0
    %v730 = vadd.f32 %v524, %v729
    %v731 = vpop.f32.mrb[0].mxu0
    %v732 = vadd.f32 %v528, %v731
    %733 = vdwg.mxu0
    %v734 = vmax.f32 %v726, 0.0
    %v735 = vmax.f32 %v728, 0.0
    %v736 = vmax.f32 %v730, 0.0
    %v737 = vmax.f32 %v732, 0.0
    %v738 = vpack.c.bf16 %v736, %v734
    %v739 = vpack.c.bf16 %v737, %v735
    %v740 = vld [vmem:[%s9] sm:$0xf]
    %v741 = vld [vmem:[%s9 + $0x4] sm:$0xf]
    %v742 = vld [vmem:[%s9 + $0x8] sm:$0xf]
    %v743 = vld [vmem:[%s9 + $0xc] sm:$0xf]
    %v744 = vld [vmem:[%s9 + $0x10] sm:$0xf]
    %v745 = vld [vmem:[%s9 + $0x14] sm:$0xf]
    %v746 = vld [vmem:[%s9 + $0x18] sm:$0xf]
    %v747 = vld [vmem:[%s9 + $0x1c] sm:$0xf]
    %v748 = vld [vmem:[%s9 + $0x20] sm:$0xf]
    %v749 = vld [vmem:[%s9 + $0x24] sm:$0xf]
    %v750 = vld [vmem:[%s9 + $0x28] sm:$0xf]
    %v751 = vld [vmem:[%s9 + $0x2c] sm:$0xf]
    %v752 = vld [vmem:[%s9 + $0x30] sm:$0xf]
    %v753 = vld [vmem:[%s9 + $0x34] sm:$0xf]
    %v754 = vld [vmem:[%s9 + $0x38] sm:$0xf]
    %v755 = vld [vmem:[%s9 + $0x3c] sm:$0xf]
    %v756 = vld [vmem:[%s9 + $0x40] sm:$0xf]
    %v757 = vld [vmem:[%s9 + $0x44] sm:$0xf]
    %v758 = vld [vmem:[%s9 + $0x48] sm:$0xf]
    %v759 = vld [vmem:[%s9 + $0x4c] sm:$0xf]
    %v760 = vld [vmem:[%s9 + $0x50] sm:$0xf]
    %v761 = vld [vmem:[%s9 + $0x54] sm:$0xf]
    %v762 = vld [vmem:[%s9 + $0x58] sm:$0xf]
    %v763 = vld [vmem:[%s9 + $0x5c] sm:$0xf]
    %v764 = vld [vmem:[%s9 + $0x60] sm:$0xf]
    %v765 = vld [vmem:[%s9 + $0x64] sm:$0xf]
    %v766 = vld [vmem:[%s9 + $0x68] sm:$0xf]
    %v767 = vld [vmem:[%s9 + $0x6c] sm:$0xf]
    %v768 = vld [vmem:[%s9 + $0x70] sm:$0xf]
    %v769 = vld [vmem:[%s9 + $0x74] sm:$0xf]
    %v770 = vld [vmem:[%s9 + $0x78] sm:$0xf]
    %v771 = vld [vmem:[%s9 + $0x7c] sm:$0xf]
    %v772 = vld [vmem:[%s10] sm:$0x1]
    %v774 = vlaneseq
    %v775 = vshrl.u32 %v774, 7
    %v776 = vsub.s32 0, %v775
    %v777 = vrot.slane %v772, %v776
    %v811 = vunpack.c.l.b16 %v740
    %v812 = vunpack.c.l.b16 %v741
    %v813 = vunpack.c.l.b16 %v742
    %v814 = vunpack.c.l.b16 %v743
    %v815 = vunpack.c.l.b16 %v744
    %v816 = vunpack.c.l.b16 %v745
    %v817 = vunpack.c.l.b16 %v746
    %v818 = vunpack.c.l.b16 %v747
    %v819 = vunpack.c.l.b16 %v748
    %v820 = vunpack.c.l.b16 %v749
    %v821 = vunpack.c.l.b16 %v750
    %v822 = vunpack.c.l.b16 %v751
    %v823 = vunpack.c.l.b16 %v752
    %v824 = vunpack.c.l.b16 %v753
    %v825 = vunpack.c.l.b16 %v754
    %v826 = vunpack.c.l.b16 %v755
    %v827 = vunpack.c.l.b16 %v756
    %v828 = vunpack.c.l.b16 %v757
    %v829 = vunpack.c.l.b16 %v758
    %v830 = vunpack.c.l.b16 %v759
    %v831 = vunpack.c.l.b16 %v760
    %v832 = vunpack.c.l.b16 %v761
    %v833 = vunpack.c.l.b16 %v762
    %v834 = vunpack.c.l.b16 %v763
    %v835 = vunpack.c.l.b16 %v764
    %v836 = vunpack.c.l.b16 %v765
    %v837 = vunpack.c.l.b16 %v766
    %v838 = vunpack.c.l.b16 %v767
    %v839 = vunpack.c.l.b16 %v768
    %v840 = vunpack.c.l.b16 %v769
    %v841 = vunpack.c.l.b16 %v770
    %v842 = vunpack.c.l.b16 %v771
    %v843 = vpack.c.b16 %v812, %v811
    %v844 = vpack.c.b16 %v814, %v813
    %v845 = vpack.c.b16 %v816, %v815
    %v846 = vpack.c.b16 %v818, %v817
    %v847 = vpack.c.b16 %v820, %v819
    %v848 = vpack.c.b16 %v822, %v821
    %v849 = vpack.c.b16 %v824, %v823
    %v850 = vpack.c.b16 %v826, %v825
    %v851 = vpack.c.b16 %v828, %v827
    %v852 = vpack.c.b16 %v830, %v829
    %v853 = vpack.c.b16 %v832, %v831
    %v854 = vpack.c.b16 %v834, %v833
    %v855 = vpack.c.b16 %v836, %v835
    %v856 = vpack.c.b16 %v838, %v837
    %v857 = vpack.c.b16 %v840, %v839
    %v858 = vpack.c.b16 %v842, %v841
    %875 = vmatprep.subr.bf16.mxu0 0
    %876 = vmatpush1.bf16.msra.mxu0 %v843
    %877 = vmatprep.subr.bf16.mxu0 0
    %878 = vmatpush1.bf16.msra.mxu0 %v844
    %879 = vmatprep.subr.bf16.mxu0 0
    %880 = vmatpush1.bf16.msra.mxu0 %v845
    %881 = vmatprep.subr.bf16.mxu0 0
    %882 = vmatpush1.bf16.msra.mxu0 %v846
    %883 = vmatprep.subr.bf16.mxu0 0
    %884 = vmatpush1.bf16.msra.mxu0 %v847
    %885 = vmatprep.subr.bf16.mxu0 0
    %886 = vmatpush1.bf16.msra.mxu0 %v848
    %887 = vmatprep.subr.bf16.mxu0 0
    %888 = vmatpush1.bf16.msra.mxu0 %v849
    %889 = vmatprep.subr.bf16.mxu0 0
    %890 = vmatpush1.bf16.msra.mxu0 %v850
    %891 = vmatprep.subr.bf16.mxu0 0
    %892 = vmatpush1.bf16.msra.mxu0 %v851
    %893 = vmatprep.subr.bf16.mxu0 0
    %894 = vmatpush1.bf16.msra.mxu0 %v852
    %895 = vmatprep.subr.bf16.mxu0 0
    %896 = vmatpush1.bf16.msra.mxu0 %v853
    %897 = vmatprep.subr.bf16.mxu0 0
    %898 = vmatpush1.bf16.msra.mxu0 %v854
    %899 = vmatprep.subr.bf16.mxu0 0
    %900 = vmatpush1.bf16.msra.mxu0 %v855
    %901 = vmatprep.subr.bf16.mxu0 0
    %902 = vmatpush1.bf16.msra.mxu0 %v856
    %903 = vmatprep.subr.bf16.mxu0 0
    %904 = vmatpush1.bf16.msra.mxu0 %v857
    %905 = vmatprep.subr.bf16.mxu0 0
    %906 = vmatpush1.bf16.msra.mxu0 %v858
    %907 = vmatprep.mubr.bf16.mxu0 %v739
    %908 = vmatmul.mubr.bf16.gmra.mrb[0].mxu0 %v738
    %v909 = vpop.f32.mrb[0].mxu0
    %v910 = vadd.f32 %v777, %v909
    %v911 = vpop.f32.mrb[0].mxu0
    %v912 = vpop.f32.mrb[0].mxu0
    %v913 = vadd.f32 %v777, %v912
    %v914 = vpop.f32.mrb[0].mxu0
    %915 = vdwg.mxu0
    %916 = vst.msk [vmem:[%s11] sm:$0xff] %vm86, %v910
    %917 = vst.msk [vmem:[%s11 + $0x8] sm:$0xff] %vm86, %v913
    // Predicated region
    $region54: #{tpu_custom_call.1} parent=1 // pred_check
      _
    $region55: #{tpu_custom_call.1} parent=1 // pred_check_branch
      %919 = sbr.rel (0) target = $region57
    $region56: #{tpu_custom_call.1} parent=1 // pred_region
      _
    $region57: #{tpu_custom_call.1} parent=1 // pred_fallthru
      _
    // Predicated region
    $region58: #{tpu_custom_call.1} parent=1 // pred_check
      _
    $region59: #{tpu_custom_call.1} parent=1 // pred_check_branch
      %921 = sbr.rel (0) target = $region61
    $region60: #{tpu_custom_call.1} parent=1 // pred_region
      _
    $region61: #{tpu_custom_call.1} parent=1 // pred_fallthru
      _
    %922 = vsyncpa [#allocation3], 1
    %923 = vsyncpa [#allocation5], 1

</llo_original>
